<compile_context>
chip_gen: v7x
topology: tpu7x:2x2x1
jax: 0.10.0
libtpu: 0.0.40
codegen_flags: <defaults>
</compile_context>

<pallas_src>
import math

import jax
import jax.numpy as jnp
from jax.experimental import pallas as pl
from jax.experimental.pallas import tpu as pltpu


def _round_up(x, m):
    return ((x + m - 1) // m) * m


def _gc_layer_kernel(a_ref, x_ref, w_ref, b_ref, o_ref, acc_ref):
    """One (row-tile i, reduction-tile k) step of relu((A_norm @ x) @ W + b)."""
    k = pl.program_id(1)

    @pl.when(k == 0)
    def _init():
        acc_ref[...] = jnp.zeros_like(acc_ref)

    # Aggregation: the N^2 term contracts against F_in (< F_out).
    # bf16 operands, f32 accumulation on the MXU.
    acc_ref[...] += jnp.dot(a_ref[...], x_ref[...],
                            preferred_element_type=jnp.float32)

    # Projection + bias + ReLU + single lane-dense store, only on the last k step.
    @pl.when(k == pl.num_programs(1) - 1)
    def _finalize():
        out = jnp.dot(acc_ref[...], w_ref[...],
                      preferred_element_type=jnp.float32) + b_ref[...]
        o_ref[...] = jnp.maximum(out, 0.0).astype(o_ref.dtype)
        # TODO(synk): batch_norm / dropout branches of AbstractGCLayer are disabled
        # by the module defaults (batch_norm=False, drop_out=0.0) and are not lowered.


def abstract_gc_layer(x, a_norm, w, b, *, tm=256, tk=512):
    """relu(A_norm @ x @ W + b), aggregation + projection fused in one Pallas kernel."""
    n, f_in = x.shape
    f_out = w.shape[1]
    b = b.reshape(1, f_out)

    # Matmul order: F_in <= F_out here, so aggregate first ((A @ x) @ W).
    # TODO(synk): for F_in > F_out the cheaper order is A @ (x @ W) (fold W into the
    # node features first); not needed for this module configuration.

    # Tile sizes: 128-aligned (v5e MXU), 256/512 defaults for v6e/v7x, clamped to the
    # padded node count so tiny graphs still satisfy the (8, 128) block constraint.
    n_128 = _round_up(n, 128)
    tm = min(tm, n_128)
    tk = min(tk, n_128)
    n_pad = _round_up(n, tm * tk // math.gcd(tm, tk))
    f_out_pad = _round_up(f_out, 128)

    # Pad + cast on the wrapper side (plain-JAX glue). Zero padding is exact:
    # padded A columns hit zero x rows; padded W/b columns are sliced off below.
    a_p = jnp.pad(a_norm, ((0, n_pad - n), (0, n_pad - n))).astype(jnp.bfloat16)
    x_p = jnp.pad(x, ((0, n_pad - n), (0, 0))).astype(jnp.bfloat16)
    w_p = jnp.pad(w, ((0, 0), (0, f_out_pad - f_out))).astype(jnp.float32)
    b_p = jnp.pad(b, ((0, 0), (0, f_out_pad - f_out))).astype(jnp.float32)

    grid = (n_pad // tm, n_pad // tk)
    flops = 2 * n_pad * n_pad * f_in + 2 * n_pad * f_in * f_out_pad
    bytes_accessed = (a_p.size * 2 + grid[0] * x_p.size * 2
                      + w_p.size * 4 + b_p.size * 4 + n_pad * f_out_pad * 4)

    # TODO(synk): for realistically sparse graphs, replace the dense A_norm tiles with
    # a block-sparse scheme (per-row-tile nonzero-column-tile lists fed through
    # PrefetchScalarGridSpec scalar prefetch) so empty tiles skip both DMA and MXU work.
    out_p = pl.pallas_call(
        _gc_layer_kernel,
        out_shape=jax.ShapeDtypeStruct((n_pad, f_out_pad), jnp.float32),
        grid_spec=pltpu.PrefetchScalarGridSpec(
            num_scalar_prefetch=0,
            grid=grid,
            in_specs=[
                pl.BlockSpec((tm, tk), lambda i, k: (i, k)),           # A_norm tile
                pl.BlockSpec((tk, f_in), lambda i, k: (k, 0)),         # x tile
                pl.BlockSpec((f_in, f_out_pad), lambda i, k: (0, 0)),  # W (resident)
                pl.BlockSpec((1, f_out_pad), lambda i, k: (0, 0)),     # bias (resident)
            ],
            out_specs=pl.BlockSpec((tm, f_out_pad), lambda i, k: (i, 0)),
            scratch_shapes=[pltpu.VMEM((tm, f_in), jnp.float32)],      # f32 accumulator
        ),
        compiler_params=pltpu.CompilerParams(
            dimension_semantics=("parallel", "arbitrary"),
            vmem_limit_bytes=32 * 1024 * 1024,
        ),
        cost_estimate=pl.CostEstimate(
            flops=flops, transcendentals=0, bytes_accessed=bytes_accessed),
    )(a_p, x_p, w_p, b_p)

    return out_p[:n, :f_out]


def build_normalized_adjacency(edge_index, num_nodes):
    """Glue: edge_index [2, E] -> dense symmetric-normalized adjacency with self-loops."""
    src, dst = edge_index[0], edge_index[1]
    adj = jnp.zeros((num_nodes, num_nodes), jnp.float32)
    adj = adj.at[dst, src].set(1.0)                   # messages flow src -> dst
    adj = adj + jnp.eye(num_nodes, dtype=jnp.float32)  # self loops
    adj = jnp.minimum(adj, 1.0)
    deg = adj.sum(axis=1)
    d_inv_sqrt = jnp.where(deg > 0, 1.0 / jnp.sqrt(deg), 0.0)
    return d_inv_sqrt[:, None] * adj * d_inv_sqrt[None, :]


if __name__ == "__main__":
    key = jax.random.PRNGKey(0)
    k_x, k_e, k_w, k_b = jax.random.split(key, 4)

    num_nodes = 16     # N
    f_in = 8           # input node-feature dim
    f_out = 32         # out_features of AbstractGCLayer
    num_edges = 48     # E

    x = jax.random.normal(k_x, (num_nodes, f_in), dtype=jnp.float32)
    edge_index = jax.random.randint(k_e, (2, num_edges), 0, num_nodes, dtype=jnp.int32)

    # Deterministic parameter init (glorot-uniform-ish weight, small random bias).
    limit = (6.0 / (f_in + f_out)) ** 0.5
    w = jax.random.uniform(k_w, (f_in, f_out), jnp.float32, -limit, limit)
    b = jax.random.uniform(k_b, (1, f_out), jnp.float32, -0.1, 0.1)

    a_norm = build_normalized_adjacency(edge_index, num_nodes)

    out = abstract_gc_layer(x, a_norm, w, b)
    out = jax.block_until_ready(out)

    # Pure-JAX reference (same bf16 rounding of the aggregation operands as the kernel).
    a_bf = a_norm.astype(jnp.bfloat16).astype(jnp.float32)
    x_bf = x.astype(jnp.bfloat16).astype(jnp.float32)
    ref = jnp.maximum((a_bf @ x_bf) @ w + b, 0.0)

    assert out.shape == (num_nodes, f_out)
    assert jnp.allclose(out, ref, atol=2e-2, rtol=2e-2), float(jnp.max(jnp.abs(out - ref)))

    print("KERNEL_OK")
</pallas_src>

<mosaic_0001>
module attributes {stable_mosaic.version = 11 : i64} {
  func.func @_gc_layer_kernel(%arg0: i32, %arg1: i32, %arg2: memref<128x128xbf16, #tpu.memory_space<vmem>>, %arg3: memref<128x8xbf16, #tpu.memory_space<vmem>>, %arg4: memref<8x128xf32, #tpu.memory_space<vmem>>, %arg5: memref<1x128xf32, #tpu.memory_space<vmem>>, %arg6: memref<128x128xf32, #tpu.memory_space<vmem>>, %arg7: memref<128x8xf32, #tpu.memory_space<vmem>>) attributes {dimension_semantics = [#tpu.dimension_semantics<parallel>, #tpu.dimension_semantics<arbitrary>], iteration_bounds = array<i64: 1, 1>, scalar_prefetch = 0 : i64, scratch_operands = 1 : i64, tpu.core_type = #tpu.core_type<tc>, window_params = [{transform_indices = @transform_0, window_bounds = array<i64: 128, 128>}, {transform_indices = @transform_1, window_bounds = array<i64: 128, 8>}, {pipeline_mode = #tpu.pipeline_mode<synchronous>, transform_indices = @transform_2, window_bounds = array<i64: 8, 128>}, {pipeline_mode = #tpu.pipeline_mode<synchronous>, transform_indices = @transform_3, window_bounds = array<i64: 1, 128>}, {transform_indices = @transform_4, window_bounds = array<i64: 128, 128>}]} {
    %c0_i32 = arith.constant 0 : i32
    %0 = arith.cmpi eq, %arg1, %c0_i32 : i32
    %1 = arith.extui %0 : i1 to i32
    %c0_i32_0 = arith.constant 0 : i32
    %2 = arith.cmpi ne, %1, %c0_i32_0 : i32
    scf.if %2 {
      %cst_10 = arith.constant 0.000000e+00 : f32
      %12 = vector.broadcast %cst_10 : f32 to vector<128x8xf32>
      %c0_11 = arith.constant 0 : index
      %c0_12 = arith.constant 0 : index
      %13 = vector.load %arg7[%c0_11, %c0_12] : memref<128x8xf32, #tpu.memory_space<vmem>>, vector<128x8xf32>
      tpu.vector_store %arg7[%c0_11, %c0_12], %12 {strides = array<i32>} : memref<128x8xf32, #tpu.memory_space<vmem>>, vector<128x8xf32>,
    } else {
    }
    %c0 = arith.constant 0 : index
    %c0_1 = arith.constant 0 : index
    %3 = vector.load %arg7[%c0, %c0_1] : memref<128x8xf32, #tpu.memory_space<vmem>>, vector<128x8xf32>
    %c0_2 = arith.constant 0 : index
    %c0_3 = arith.constant 0 : index
    %4 = vector.load %arg2[%c0_2, %c0_3] : memref<128x128xbf16, #tpu.memory_space<vmem>>, vector<128x128xbf16>
    %c0_4 = arith.constant 0 : index
    %c0_5 = arith.constant 0 : index
    %5 = vector.load %arg3[%c0_4, %c0_5] : memref<128x8xbf16, #tpu.memory_space<vmem>>, vector<128x8xbf16>
    %cst = arith.constant dense<0.000000e+00> : vector<128x8xf32>
    %6 = tpu.matmul %4, %5, %cst {dimension_numbers = #tpu.dot_dimension_numbers<[1], [0], [0], [1], [0, 0, 1, 1], [], []>} : vector<128x128xbf16>, vector<128x8xbf16>, vector<128x8xf32> -> vector<128x8xf32>
    %7 = arith.addf %3, %6 : vector<128x8xf32>
    %c0_6 = arith.constant 0 : index
    %c0_7 = arith.constant 0 : index
    %8 = vector.load %arg7[%c0_6, %c0_7] : memref<128x8xf32, #tpu.memory_space<vmem>>, vector<128x8xf32>
    tpu.vector_store %arg7[%c0_6, %c0_7], %7 {strides = array<i32>} : memref<128x8xf32, #tpu.memory_space<vmem>>, vector<128x8xf32>,
    %c0_i32_8 = arith.constant 0 : i32
    %9 = arith.cmpi eq, %arg1, %c0_i32_8 : i32
    %10 = arith.extui %9 : i1 to i32
    %c0_i32_9 = arith.constant 0 : i32
    %11 = arith.cmpi ne, %10, %c0_i32_9 : i32
    scf.if %11 {
      %c0_10 = arith.constant 0 : index
      %c0_11 = arith.constant 0 : index
      %12 = vector.load %arg7[%c0_10, %c0_11] : memref<128x8xf32, #tpu.memory_space<vmem>>, vector<128x8xf32>
      %c0_12 = arith.constant 0 : index
      %c0_13 = arith.constant 0 : index
      %13 = vector.load %arg4[%c0_12, %c0_13] : memref<8x128xf32, #tpu.memory_space<vmem>>, vector<8x128xf32>
      %cst_14 = arith.constant dense<0.000000e+00> : vector<128x128xf32>
      %14 = tpu.matmul %12, %13, %cst_14 {dimension_numbers = #tpu.dot_dimension_numbers<[1], [0], [0], [1], [0, 0, 1, 1], [], []>} : vector<128x8xf32>, vector<8x128xf32>, vector<128x128xf32> -> vector<128x128xf32>
      %c0_15 = arith.constant 0 : index
      %c0_16 = arith.constant 0 : index
      %15 = vector.load %arg5[%c0_15, %c0_16] : memref<1x128xf32, #tpu.memory_space<vmem>>, vector<1x128xf32>
      %16 = vector.broadcast %15 : vector<1x128xf32> to vector<128x128xf32>
      %17 = arith.addf %14, %16 : vector<128x128xf32>
      %cst_17 = arith.constant 0.000000e+00 : f32
      %18 = vector.broadcast %cst_17 : f32 to vector<128x128xf32>
      %19 = arith.maximumf %17, %18 : vector<128x128xf32>
      %c0_18 = arith.constant 0 : index
      %c0_19 = arith.constant 0 : index
      %20 = vector.load %arg6[%c0_18, %c0_19] : memref<128x128xf32, #tpu.memory_space<vmem>>, vector<128x128xf32>
      tpu.vector_store %arg6[%c0_18, %c0_19], %19 {strides = array<i32>} : memref<128x128xf32, #tpu.memory_space<vmem>>, vector<128x128xf32>,
    } else {
    }
    return
  }
  func.func @transform_0(%arg0: i32, %arg1: i32) -> (i32, i32) {
    %c0_i32 = arith.constant 0 : i32
    return %arg0, %arg1 : i32, i32
  }
  func.func @transform_1(%arg0: i32, %arg1: i32) -> (i32, i32) {
    %c0_i32 = arith.constant 0 : i32
    %c0_i32_0 = arith.constant 0 : i32
    return %arg1, %c0_i32 : i32, i32
  }
  func.func @transform_2(%arg0: i32, %arg1: i32) -> (i32, i32) {
    %c0_i32 = arith.constant 0 : i32
    %c0_i32_0 = arith.constant 0 : i32
    %c0_i32_1 = arith.constant 0 : i32
    return %c0_i32, %c0_i32_0 : i32, i32
  }
  func.func @transform_3(%arg0: i32, %arg1: i32) -> (i32, i32) {
    %c0_i32 = arith.constant 0 : i32
    %c0_i32_0 = arith.constant 0 : i32
    %c0_i32_1 = arith.constant 0 : i32
    return %c0_i32, %c0_i32_0 : i32, i32
  }
  func.func @transform_4(%arg0: i32, %arg1: i32) -> (i32, i32) {
    %c0_i32 = arith.constant 0 : i32
    %c0_i32_0 = arith.constant 0 : i32
    return %arg0, %c0_i32 : i32, i32
  }
}

</mosaic_0001>

<llo_original>
// kernel: tpu_custom_call.1
$region0: #{tpu_custom_call.1}
  #allocation0 [shape = 'u32[]', space=smem, size = 0x4, offset = 0x4, fixed_abs, tag = 'smem constant byte address 0x4 - core index']
  #allocation1 [shape = 'u32[144,128]{1,0:T(1,128)}', space=vmem, size = 0x12000, scoped, tag = 'internal scratch']
  #allocation2 [shape = 'f32[128,8]{1,0:T(8,128)}', space=vmem, size = 0x10000, scoped, tag = 'scratch operand']
  %s0 = inlined_call_operand.vmem [shape: bf16[128,128], index: 0, kind: input, shape index: {}]
  %s1 = inlined_call_operand.vmem [shape: bf16[128,8], index: 1, kind: input, shape index: {}]
  %s2 = inlined_call_operand.vmem [shape: f32[8,128], index: 2, kind: input, shape index: {}]
  %s3 = inlined_call_operand.vmem [shape: f32[1,128], index: 3, kind: input, shape index: {}]
  %s4 = inlined_call_operand.hbm [shape: f32[128,128], index: 4, kind: output, shape index: {}]
  %s5 = sld [smem:[#allocation0]]
  $region34: #{tpu_custom_call.1} parent=0
    _
  %s7 = ssub.s32 1, %s5
  %s8 = scalar_select 0, %s7, %s5
  $region1: #{tpu_custom_call.1} parent=0
    #allocation3 [shape = 'u8[65536]{0}', space=vmem, size = 0x10000, scoped, tag = 'output window, operand 0, single buffered']
    #allocation4 [shape = 's32[1]{0}', space=sflag, size = 0x4, scoped, tag = 'scoped memory for tpu_custom_call.1']
    %9 = vsyncpa [#allocation4], 0
    // Predicated region
    $region2: #{tpu_custom_call.1} parent=1 // pred_check
      _
    $region3: #{tpu_custom_call.1} parent=1 // pred_check_branch
      %11 = sbr.rel (0) target = $region5
    $region4: #{tpu_custom_call.1} parent=1 // pred_region
      _
    $region5: #{tpu_custom_call.1} parent=1 // pred_fallthru
      _
    // Predicated region
    $region6: #{tpu_custom_call.1} parent=1 // pred_check
      _
    $region7: #{tpu_custom_call.1} parent=1 // pred_check_branch
      %13 = sbr.rel (0) target = $region9
    $region8: #{tpu_custom_call.1} parent=1 // pred_region
      _
    $region9: #{tpu_custom_call.1} parent=1 // pred_fallthru
      _
    // Predicated region
    $region10: #{tpu_custom_call.1} parent=1 // pred_check
      _
    $region11: #{tpu_custom_call.1} parent=1 // pred_check_branch
      %15 = sbr.rel (0) target = $region13
    $region12: #{tpu_custom_call.1} parent=1 // pred_region
      _
    $region13: #{tpu_custom_call.1} parent=1 // pred_fallthru
      _
    // Predicated region
    $region14: #{tpu_custom_call.1} parent=1 // pred_check
      _
    $region15: #{tpu_custom_call.1} parent=1 // pred_check_branch
      %17 = sbr.rel (0) target = $region17
    $region16: #{tpu_custom_call.1} parent=1 // pred_region
      _
    $region17: #{tpu_custom_call.1} parent=1 // pred_fallthru
      _
    %p19 = scmp.eq.s32.totalorder 0, 0
    // Predicated region
    $region18: #{tpu_custom_call.1} parent=1 // pred_check
      %p20 = pneg %p19
    $region19: #{tpu_custom_call.1} parent=1 // pred_check_branch
      %22 = sbr.rel (%p20) target = $region21
    $region20: #{tpu_custom_call.1} parent=1 // pred_region
      %vm23 = vcmask 64512
      %24 = vst.msk [vmem:[#allocation2] sm:$0xff] %vm23, 0.0
      %25 = vst.msk [vmem:[#allocation2 + $0x8] sm:$0xff] %vm23, 0.0
      %26 = vst.msk [vmem:[#allocation2 + $0x10] sm:$0xff] %vm23, 0.0
      %27 = vst.msk [vmem:[#allocation2 + $0x18] sm:$0xff] %vm23, 0.0
      %28 = vst.msk [vmem:[#allocation2 + $0x20] sm:$0xff] %vm23, 0.0
      %29 = vst.msk [vmem:[#allocation2 + $0x28] sm:$0xff] %vm23, 0.0
      %30 = vst.msk [vmem:[#allocation2 + $0x30] sm:$0xff] %vm23, 0.0
      %31 = vst.msk [vmem:[#allocation2 + $0x38] sm:$0xff] %vm23, 0.0
      %32 = vst.msk [vmem:[#allocation2 + $0x40] sm:$0xff] %vm23, 0.0
      %33 = vst.msk [vmem:[#allocation2 + $0x48] sm:$0xff] %vm23, 0.0
      %34 = vst.msk [vmem:[#allocation2 + $0x50] sm:$0xff] %vm23, 0.0
      %35 = vst.msk [vmem:[#allocation2 + $0x58] sm:$0xff] %vm23, 0.0
      %36 = vst.msk [vmem:[#allocation2 + $0x60] sm:$0xff] %vm23, 0.0
      %37 = vst.msk [vmem:[#allocation2 + $0x68] sm:$0xff] %vm23, 0.0
      %38 = vst.msk [vmem:[#allocation2 + $0x70] sm:$0xff] %vm23, 0.0
      %39 = vst.msk [vmem:[#allocation2 + $0x78] sm:$0xff] %vm23, 0.0
    $region21: #{tpu_custom_call.1} parent=1 // pred_fallthru
      _
    %v40 = vld [vmem:[#allocation2] sm:$0xff]
    %v41 = vld [vmem:[#allocation2 + $0x8] sm:$0xff]
    %v42 = vld [vmem:[#allocation2 + $0x10] sm:$0xff]
    %v43 = vld [vmem:[#allocation2 + $0x18] sm:$0xff]
    %v44 = vld [vmem:[#allocation2 + $0x20] sm:$0xff]
    %v45 = vld [vmem:[#allocation2 + $0x28] sm:$0xff]
    %v46 = vld [vmem:[#allocation2 + $0x30] sm:$0xff]
    %v47 = vld [vmem:[#allocation2 + $0x38] sm:$0xff]
    %v48 = vld [vmem:[#allocation2 + $0x40] sm:$0xff]
    %v49 = vld [vmem:[#allocation2 + $0x48] sm:$0xff]
    %v50 = vld [vmem:[#allocation2 + $0x50] sm:$0xff]
    %v51 = vld [vmem:[#allocation2 + $0x58] sm:$0xff]
    %v52 = vld [vmem:[#allocation2 + $0x60] sm:$0xff]
    %v53 = vld [vmem:[#allocation2 + $0x68] sm:$0xff]
    %v54 = vld [vmem:[#allocation2 + $0x70] sm:$0xff]
    %v55 = vld [vmem:[#allocation2 + $0x78] sm:$0xff]
    %v56 = vld [vmem:[%s0] sm:$0xf]
    %v57 = vld [vmem:[%s0 + $0x4] sm:$0xf]
    %v58 = vld [vmem:[%s0 + $0x8] sm:$0xf]
    %v59 = vld [vmem:[%s0 + $0xc] sm:$0xf]
    %v60 = vld [vmem:[%s0 + $0x10] sm:$0xf]
    %v61 = vld [vmem:[%s0 + $0x14] sm:$0xf]
    %v62 = vld [vmem:[%s0 + $0x18] sm:$0xf]
    %v63 = vld [vmem:[%s0 + $0x1c] sm:$0xf]
    %v64 = vld [vmem:[%s0 + $0x20] sm:$0xf]
    %v65 = vld [vmem:[%s0 + $0x24] sm:$0xf]
    %v66 = vld [vmem:[%s0 + $0x28] sm:$0xf]
    %v67 = vld [vmem:[%s0 + $0x2c] sm:$0xf]
    %v68 = vld [vmem:[%s0 + $0x30] sm:$0xf]
    %v69 = vld [vmem:[%s0 + $0x34] sm:$0xf]
    %v70 = vld [vmem:[%s0 + $0x38] sm:$0xf]
    %v71 = vld [vmem:[%s0 + $0x3c] sm:$0xf]
    %v72 = vld [vmem:[%s1] sm:$0xf]
    %v73 = vld [vmem:[%s1 + $0x4] sm:$0xf]
    %v74 = vld [vmem:[%s1 + $0x8] sm:$0xf]
    %v75 = vld [vmem:[%s1 + $0xc] sm:$0xf]
    %v76 = vld [vmem:[%s1 + $0x10] sm:$0xf]
    %v77 = vld [vmem:[%s1 + $0x14] sm:$0xf]
    %v78 = vld [vmem:[%s1 + $0x18] sm:$0xf]
    %v79 = vld [vmem:[%s1 + $0x1c] sm:$0xf]
    %v80 = vld [vmem:[%s1 + $0x20] sm:$0xf]
    %v81 = vld [vmem:[%s1 + $0x24] sm:$0xf]
    %v82 = vld [vmem:[%s1 + $0x28] sm:$0xf]
    %v83 = vld [vmem:[%s1 + $0x2c] sm:$0xf]
    %v84 = vld [vmem:[%s1 + $0x30] sm:$0xf]
    %v85 = vld [vmem:[%s1 + $0x34] sm:$0xf]
    %v86 = vld [vmem:[%s1 + $0x38] sm:$0xf]
    %v87 = vld [vmem:[%s1 + $0x3c] sm:$0xf]
    %v104 = vunpack.c.l.b16 %v56
    %v105 = vunpack.c.l.b16 %v57
    %v106 = vunpack.c.l.b16 %v58
    %v107 = vunpack.c.l.b16 %v59
    %v108 = vunpack.c.l.b16 %v60
    %v109 = vunpack.c.l.b16 %v61
    %v110 = vunpack.c.l.b16 %v62
    %v111 = vunpack.c.l.b16 %v63
    %v112 = vunpack.c.l.b16 %v64
    %v113 = vunpack.c.l.b16 %v65
    %v114 = vunpack.c.l.b16 %v66
    %v115 = vunpack.c.l.b16 %v67
    %v116 = vunpack.c.l.b16 %v68
    %v117 = vunpack.c.l.b16 %v69
    %v118 = vunpack.c.l.b16 %v70
    %v119 = vunpack.c.l.b16 %v71
    %v120 = vpack.c.b16 %v105, %v104
    %v121 = vpack.c.b16 %v107, %v106
    %v122 = vpack.c.b16 %v109, %v108
    %v123 = vpack.c.b16 %v111, %v110
    %v124 = vpack.c.b16 %v113, %v112
    %v125 = vpack.c.b16 %v115, %v114
    %v126 = vpack.c.b16 %v117, %v116
    %v127 = vpack.c.b16 %v119, %v118
    %v152 = vunpack.c.l.b16 %v72
    %v153 = vunpack.c.l.b16 %v73
    %v154 = vunpack.c.l.b16 %v74
    %v155 = vunpack.c.l.b16 %v75
    %v156 = vunpack.c.l.b16 %v76
    %v157 = vunpack.c.l.b16 %v77
    %v158 = vunpack.c.l.b16 %v78
    %v159 = vunpack.c.l.b16 %v79
    %v160 = vunpack.c.l.b16 %v80
    %v161 = vunpack.c.l.b16 %v81
    %v162 = vunpack.c.l.b16 %v82
    %v163 = vunpack.c.l.b16 %v83
    %v164 = vunpack.c.l.b16 %v84
    %v165 = vunpack.c.l.b16 %v85
    %v166 = vunpack.c.l.b16 %v86
    %v167 = vunpack.c.l.b16 %v87
    %v168 = vpack.c.b16 %v153, %v152
    %v169 = vpack.c.b16 %v155, %v154
    %v170 = vpack.c.b16 %v157, %v156
    %v171 = vpack.c.b16 %v159, %v158
    %v172 = vpack.c.b16 %v161, %v160
    %v173 = vpack.c.b16 %v163, %v162
    %v174 = vpack.c.b16 %v165, %v164
    %v175 = vpack.c.b16 %v167, %v166
    %184 = vmatprep.subr.bf16.mxu0 0
    %185 = vmatpush1.bf16.msra.mxu0 %v168
    %186 = vmatprep.subr.bf16.mxu0 0
    %187 = vmatpush1.bf16.msra.mxu0 %v169
    %188 = vmatprep.subr.bf16.mxu0 0
    %189 = vmatpush1.bf16.msra.mxu0 %v170
    %190 = vmatprep.subr.bf16.mxu0 0
    %191 = vmatpush1.bf16.msra.mxu0 %v171
    %192 = vmatprep.subr.bf16.mxu0 0
    %193 = vmatpush1.bf16.msra.mxu0 %v172
    %194 = vmatprep.subr.bf16.mxu0 0
    %195 = vmatpush1.bf16.msra.mxu0 %v173
    %196 = vmatprep.subr.bf16.mxu0 0
    %197 = vmatpush1.bf16.msra.mxu0 %v174
    %198 = vmatprep.subr.bf16.mxu0 0
    %199 = vmatpush1.bf16.msra.mxu0 %v175
    %200 = vmatprep.subr.bf16.mxu0 0
    %201 = vmatpush1.bf16.msra.mxu0 0
    %202 = vmatprep.subr.bf16.mxu0 0
    %203 = vmatpush1.bf16.msra.mxu0 0
    %204 = vmatprep.subr.bf16.mxu0 0
    %205 = vmatpush1.bf16.msra.mxu0 0
    %206 = vmatprep.subr.bf16.mxu0 0
    %207 = vmatpush1.bf16.msra.mxu0 0
    %208 = vmatprep.subr.bf16.mxu0 0
    %209 = vmatpush1.bf16.msra.mxu0 0
    %210 = vmatprep.subr.bf16.mxu0 0
    %211 = vmatpush1.bf16.msra.mxu0 0
    %212 = vmatprep.subr.bf16.mxu0 0
    %213 = vmatpush1.bf16.msra.mxu0 0
    %214 = vmatprep.subr.bf16.mxu0 0
    %215 = vmatpush1.bf16.msra.mxu0 0
    %216 = vmatprep.mubr.bf16.mxu0 0
    %217 = vmatmul.mubr.bf16.gmra.mrb[0].mxu0 %v120
    %v218 = vpop.f32.mrb[0].mxu0
    %v219 = vadd.f32 0.0, %v218
    %v220 = vpop.f32.mrb[0].mxu0
    %v221 = vpop.f32.mrb[0].mxu0
    %v222 = vadd.f32 0.0, %v221
    %v223 = vpop.f32.mrb[0].mxu0
    %224 = vmatprep.mubr.bf16.mxu0 0
    %225 = vmatmul.mubr.bf16.gmra.mrb[0].mxu0 %v121
    %v226 = vpop.f32.mrb[0].mxu0
    %v227 = vadd.f32 0.0, %v226
    %v228 = vpop.f32.mrb[0].mxu0
    %v229 = vpop.f32.mrb[0].mxu0
    %v230 = vadd.f32 0.0, %v229
    %v231 = vpop.f32.mrb[0].mxu0
    %232 = vmatprep.mubr.bf16.mxu0 0
    %233 = vmatmul.mubr.bf16.gmra.mrb[0].mxu0 %v122
    %v234 = vpop.f32.mrb[0].mxu0
    %v235 = vadd.f32 0.0, %v234
    %v236 = vpop.f32.mrb[0].mxu0
    %v237 = vpop.f32.mrb[0].mxu0
    %v238 = vadd.f32 0.0, %v237
    %v239 = vpop.f32.mrb[0].mxu0
    %240 = vmatprep.mubr.bf16.mxu0 0
    %241 = vmatmul.mubr.bf16.gmra.mrb[0].mxu0 %v123
    %v242 = vpop.f32.mrb[0].mxu0
    %v243 = vadd.f32 0.0, %v242
    %v244 = vpop.f32.mrb[0].mxu0
    %v245 = vpop.f32.mrb[0].mxu0
    %v246 = vadd.f32 0.0, %v245
    %v247 = vpop.f32.mrb[0].mxu0
    %248 = vmatprep.mubr.bf16.mxu0 0
    %249 = vmatmul.mubr.bf16.gmra.mrb[0].mxu0 %v124
    %v250 = vpop.f32.mrb[0].mxu0
    %v251 = vadd.f32 0.0, %v250
    %v252 = vpop.f32.mrb[0].mxu0
    %v253 = vpop.f32.mrb[0].mxu0
    %v254 = vadd.f32 0.0, %v253
    %v255 = vpop.f32.mrb[0].mxu0
    %256 = vmatprep.mubr.bf16.mxu0 0
    %257 = vmatmul.mubr.bf16.gmra.mrb[0].mxu0 %v125
    %v258 = vpop.f32.mrb[0].mxu0
    %v259 = vadd.f32 0.0, %v258
    %v260 = vpop.f32.mrb[0].mxu0
    %v261 = vpop.f32.mrb[0].mxu0
    %v262 = vadd.f32 0.0, %v261
    %v263 = vpop.f32.mrb[0].mxu0
    %264 = vmatprep.mubr.bf16.mxu0 0
    %265 = vmatmul.mubr.bf16.gmra.mrb[0].mxu0 %v126
    %v266 = vpop.f32.mrb[0].mxu0
    %v267 = vadd.f32 0.0, %v266
    %v268 = vpop.f32.mrb[0].mxu0
    %v269 = vpop.f32.mrb[0].mxu0
    %v270 = vadd.f32 0.0, %v269
    %v271 = vpop.f32.mrb[0].mxu0
    %272 = vmatprep.mubr.bf16.mxu0 0
    %273 = vmatmul.mubr.bf16.gmra.mrb[0].mxu0 %v127
    %v274 = vpop.f32.mrb[0].mxu0
    %v275 = vadd.f32 0.0, %v274
    %v276 = vpop.f32.mrb[0].mxu0
    %v277 = vpop.f32.mrb[0].mxu0
    %v278 = vadd.f32 0.0, %v277
    %v279 = vpop.f32.mrb[0].mxu0
    %280 = vdwg.mxu0
    %v281 = vadd.f32 %v40, %v219
    %v282 = vadd.f32 %v41, %v222
    %v283 = vadd.f32 %v42, %v227
    %v284 = vadd.f32 %v43, %v230
    %v285 = vadd.f32 %v44, %v235
    %v286 = vadd.f32 %v45, %v238
    %v287 = vadd.f32 %v46, %v243
    %v288 = vadd.f32 %v47, %v246
    %v289 = vadd.f32 %v48, %v251
    %v290 = vadd.f32 %v49, %v254
    %v291 = vadd.f32 %v50, %v259
    %v292 = vadd.f32 %v51, %v262
    %v293 = vadd.f32 %v52, %v267
    %v294 = vadd.f32 %v53, %v270
    %v295 = vadd.f32 %v54, %v275
    %v296 = vadd.f32 %v55, %v278
    %vm297 = vcmask 64512
    %298 = vst.msk [vmem:[#allocation2] sm:$0xff] %vm297, %v281
    %299 = vst.msk [vmem:[#allocation2 + $0x8] sm:$0xff] %vm297, %v282
    %300 = vst.msk [vmem:[#allocation2 + $0x10] sm:$0xff] %vm297, %v283
    %301 = vst.msk [vmem:[#allocation2 + $0x18] sm:$0xff] %vm297, %v284
    %302 = vst.msk [vmem:[#allocation2 + $0x20] sm:$0xff] %vm297, %v285
    %303 = vst.msk [vmem:[#allocation2 + $0x28] sm:$0xff] %vm297, %v286
    %304 = vst.msk [vmem:[#allocation2 + $0x30] sm:$0xff] %vm297, %v287
    %305 = vst.msk [vmem:[#allocation2 + $0x38] sm:$0xff] %vm297, %v288
    %306 = vst.msk [vmem:[#allocation2 + $0x40] sm:$0xff] %vm297, %v289
    %307 = vst.msk [vmem:[#allocation2 + $0x48] sm:$0xff] %vm297, %v290
    %308 = vst.msk [vmem:[#allocation2 + $0x50] sm:$0xff] %vm297, %v291
    %309 = vst.msk [vmem:[#allocation2 + $0x58] sm:$0xff] %vm297, %v292
    %310 = vst.msk [vmem:[#allocation2 + $0x60] sm:$0xff] %vm297, %v293
    %311 = vst.msk [vmem:[#allocation2 + $0x68] sm:$0xff] %vm297, %v294
    %312 = vst.msk [vmem:[#allocation2 + $0x70] sm:$0xff] %vm297, %v295
    %313 = vst.msk [vmem:[#allocation2 + $0x78] sm:$0xff] %vm297, %v296
    // Predicated region
    $region22: #{tpu_custom_call.1} parent=1 // pred_check
      %p314 = pneg %p19
    $region23: #{tpu_custom_call.1} parent=1 // pred_check_branch
      %316 = sbr.rel (%p314) target = $region25
    $region24: #{tpu_custom_call.1} parent=1 // pred_region
      %v317 = vld [vmem:[#allocation2] sm:$0xff]
      %v318 = vld [vmem:[#allocation2 + $0x8] sm:$0xff]
      %v319 = vld [vmem:[#allocation2 + $0x10] sm:$0xff]
      %v320 = vld [vmem:[#allocation2 + $0x18] sm:$0xff]
      %v321 = vld [vmem:[#allocation2 + $0x20] sm:$0xff]
      %v322 = vld [vmem:[#allocation2 + $0x28] sm:$0xff]
      %v323 = vld [vmem:[#allocation2 + $0x30] sm:$0xff]
      %v324 = vld [vmem:[#allocation2 + $0x38] sm:$0xff]
      %v325 = vld [vmem:[#allocation2 + $0x40] sm:$0xff]
      %v326 = vld [vmem:[#allocation2 + $0x48] sm:$0xff]
      %v327 = vld [vmem:[#allocation2 + $0x50] sm:$0xff]
      %v328 = vld [vmem:[#allocation2 + $0x58] sm:$0xff]
      %v329 = vld [vmem:[#allocation2 + $0x60] sm:$0xff]
      %v330 = vld [vmem:[#allocation2 + $0x68] sm:$0xff]
      %v331 = vld [vmem:[#allocation2 + $0x70] sm:$0xff]
      %v332 = vld [vmem:[#allocation2 + $0x78] sm:$0xff]
      %v333 = vld [vmem:[%s2] sm:$0xff]
      %v334 = vld [vmem:[%s3] sm:$0x1]
      %v336 = vlaneseq
      %v337 = vshrl.u32 %v336, 7
      %v338 = vsub.s32 0, %v337
      %v339 = vrot.slane %v334, %v338
      %v342 = vsel %vm297, %v317, 0
      %v345 = vsel %vm297, %v318, 0
      %v348 = vsel %vm297, %v319, 0
      %v351 = vsel %vm297, %v320, 0
      %v354 = vsel %vm297, %v321, 0
      %v357 = vsel %vm297, %v322, 0
      %v360 = vsel %vm297, %v323, 0
      %v363 = vsel %vm297, %v324, 0
      %v366 = vsel %vm297, %v325, 0
      %v369 = vsel %vm297, %v326, 0
      %v372 = vsel %vm297, %v327, 0
      %v375 = vsel %vm297, %v328, 0
      %v378 = vsel %vm297, %v329, 0
      %v381 = vsel %vm297, %v330, 0
      %v384 = vsel %vm297, %v331, 0
      %v387 = vsel %vm297, %v332, 0
      %389 = vmatprep.subr.mxu0 0.0
      %390 = vmatpush1.msra.mxu0 %v333
      %391 = vmatprep.subr.mxu0 0.0
      %392 = vmatpush1.msra.mxu0 0.0
      %393 = vmatprep.subr.mxu0 0.0
      %394 = vmatpush1.msra.mxu0 0.0
      %395 = vmatprep.subr.mxu0 0.0
      %396 = vmatpush1.msra.mxu0 0.0
      %397 = vmatprep.subr.mxu0 0.0
      %398 = vmatpush1.msra.mxu0 0.0
      %399 = vmatprep.subr.mxu0 0.0
      %400 = vmatpush1.msra.mxu0 0.0
      %401 = vmatprep.subr.mxu0 0.0
      %402 = vmatpush1.msra.mxu0 0.0
      %403 = vmatprep.subr.mxu0 0.0
      %404 = vmatpush1.msra.mxu0 0.0
      %405 = vmatprep.subr.mxu0 0.0
      %406 = vmatpush1.msra.mxu0 0.0
      %407 = vmatprep.subr.mxu0 0.0
      %408 = vmatpush1.msra.mxu0 0.0
      %409 = vmatprep.subr.mxu0 0.0
      %410 = vmatpush1.msra.mxu0 0.0
      %411 = vmatprep.subr.mxu0 0.0
      %412 = vmatpush1.msra.mxu0 0.0
      %413 = vmatprep.subr.mxu0 0.0
      %414 = vmatpush1.msra.mxu0 0.0
      %415 = vmatprep.subr.mxu0 0.0
      %416 = vmatpush1.msra.mxu0 0.0
      %417 = vmatprep.subr.mxu0 0.0
      %418 = vmatpush1.msra.mxu0 0.0
      %419 = vmatprep.subr.mxu0 0.0
      %420 = vmatpush1.msra.mxu0 0.0
      %421 = vmatprep.subr.mxu0 0.0
      %422 = vmatpush1.msra.mxu0 0.0
      %423 = vmatprep.subr.mxu0 0.0
      %424 = vmatpush1.msra.mxu0 0.0
      %425 = vmatprep.subr.mxu0 0.0
      %426 = vmatpush1.msra.mxu0 0.0
      %427 = vmatprep.subr.mxu0 0.0
      %428 = vmatpush1.msra.mxu0 0.0
      %429 = vmatprep.subr.mxu0 0.0
      %430 = vmatpush1.msra.mxu0 0.0
      %431 = vmatprep.subr.mxu0 0.0
      %432 = vmatpush1.msra.mxu0 0.0
      %433 = vmatprep.subr.mxu0 0.0
      %434 = vmatpush1.msra.mxu0 0.0
      %435 = vmatprep.subr.mxu0 0.0
      %436 = vmatpush1.msra.mxu0 0.0
      %437 = vmatprep.subr.mxu0 0.0
      %438 = vmatpush1.msra.mxu0 0.0
      %439 = vmatprep.subr.mxu0 0.0
      %440 = vmatpush1.msra.mxu0 0.0
      %441 = vmatprep.subr.mxu0 0.0
      %442 = vmatpush1.msra.mxu0 0.0
      %443 = vmatprep.subr.mxu0 0.0
      %444 = vmatpush1.msra.mxu0 0.0
      %445 = vmatprep.subr.mxu0 0.0
      %446 = vmatpush1.msra.mxu0 0.0
      %447 = vmatprep.subr.mxu0 0.0
      %448 = vmatpush1.msra.mxu0 0.0
      %449 = vmatprep.subr.mxu0 0.0
      %450 = vmatpush1.msra.mxu0 0.0
      %451 = vmatprep.subr.mxu0 0.0
      %452 = vmatpush1.msra.mxu0 0.0
      %453 = vmatprep.mubr.f32.mxu0 0.0
      %454 = vmatmul.mubr.f32.gmra.mrb[0].mxu0 %v342
      %v455 = vpop.f32.mrb[0].mxu0
      %v456 = vadd.f32 %v339, %v455
      %v457 = vpop.f32.mrb[0].mxu0
      %458 = vmatprep.mubr.f32.mxu0 0.0
      %459 = vmatmul.mubr.f32.gmra.mrb[0].mxu0 %v345
      %v460 = vpop.f32.mrb[0].mxu0
      %v461 = vadd.f32 %v339, %v460
      %v462 = vpop.f32.mrb[0].mxu0
      %463 = vmatprep.mubr.f32.mxu0 0.0
      %464 = vmatmul.mubr.f32.gmra.mrb[0].mxu0 %v348
      %v465 = vpop.f32.mrb[0].mxu0
      %v466 = vadd.f32 %v339, %v465
      %v467 = vpop.f32.mrb[0].mxu0
      %468 = vmatprep.mubr.f32.mxu0 0.0
      %469 = vmatmul.mubr.f32.gmra.mrb[0].mxu0 %v351
      %v470 = vpop.f32.mrb[0].mxu0
      %v471 = vadd.f32 %v339, %v470
      %v472 = vpop.f32.mrb[0].mxu0
      %473 = vmatprep.mubr.f32.mxu0 0.0
      %474 = vmatmul.mubr.f32.gmra.mrb[0].mxu0 %v354
      %v475 = vpop.f32.mrb[0].mxu0
      %v476 = vadd.f32 %v339, %v475
      %v477 = vpop.f32.mrb[0].mxu0
      %478 = vmatprep.mubr.f32.mxu0 0.0
      %479 = vmatmul.mubr.f32.gmra.mrb[0].mxu0 %v357
      %v480 = vpop.f32.mrb[0].mxu0
      %v481 = vadd.f32 %v339, %v480
      %v482 = vpop.f32.mrb[0].mxu0
      %483 = vmatprep.mubr.f32.mxu0 0.0
      %484 = vmatmul.mubr.f32.gmra.mrb[0].mxu0 %v360
      %v485 = vpop.f32.mrb[0].mxu0
      %v486 = vadd.f32 %v339, %v485
      %v487 = vpop.f32.mrb[0].mxu0
      %488 = vmatprep.mubr.f32.mxu0 0.0
      %489 = vmatmul.mubr.f32.gmra.mrb[0].mxu0 %v363
      %v490 = vpop.f32.mrb[0].mxu0
      %v491 = vadd.f32 %v339, %v490
      %v492 = vpop.f32.mrb[0].mxu0
      %493 = vmatprep.mubr.f32.mxu0 0.0
      %494 = vmatmul.mubr.f32.gmra.mrb[0].mxu0 %v366
      %v495 = vpop.f32.mrb[0].mxu0
      %v496 = vadd.f32 %v339, %v495
      %v497 = vpop.f32.mrb[0].mxu0
      %498 = vmatprep.mubr.f32.mxu0 0.0
      %499 = vmatmul.mubr.f32.gmra.mrb[0].mxu0 %v369
      %v500 = vpop.f32.mrb[0].mxu0
      %v501 = vadd.f32 %v339, %v500
      %v502 = vpop.f32.mrb[0].mxu0
      %503 = vmatprep.mubr.f32.mxu0 0.0
      %504 = vmatmul.mubr.f32.gmra.mrb[0].mxu0 %v372
      %v505 = vpop.f32.mrb[0].mxu0
      %v506 = vadd.f32 %v339, %v505
      %v507 = vpop.f32.mrb[0].mxu0
      %508 = vmatprep.mubr.f32.mxu0 0.0
      %509 = vmatmul.mubr.f32.gmra.mrb[0].mxu0 %v375
      %v510 = vpop.f32.mrb[0].mxu0
      %v511 = vadd.f32 %v339, %v510
      %v512 = vpop.f32.mrb[0].mxu0
      %513 = vmatprep.mubr.f32.mxu0 0.0
      %514 = vmatmul.mubr.f32.gmra.mrb[0].mxu0 %v378
      %v515 = vpop.f32.mrb[0].mxu0
      %v516 = vadd.f32 %v339, %v515
      %v517 = vpop.f32.mrb[0].mxu0
      %518 = vmatprep.mubr.f32.mxu0 0.0
      %519 = vmatmul.mubr.f32.gmra.mrb[0].mxu0 %v381
      %v520 = vpop.f32.mrb[0].mxu0
      %v521 = vadd.f32 %v339, %v520
      %v522 = vpop.f32.mrb[0].mxu0
      %523 = vmatprep.mubr.f32.mxu0 0.0
      %524 = vmatmul.mubr.f32.gmra.mrb[0].mxu0 %v384
      %v525 = vpop.f32.mrb[0].mxu0
      %v526 = vadd.f32 %v339, %v525
      %v527 = vpop.f32.mrb[0].mxu0
      %528 = vmatprep.mubr.f32.mxu0 0.0
      %529 = vmatmul.mubr.f32.gmra.mrb[0].mxu0 %v387
      %v530 = vpop.f32.mrb[0].mxu0
      %v531 = vadd.f32 %v339, %v530
      %v532 = vpop.f32.mrb[0].mxu0
      %533 = vdwg.mxu0
      %v534 = vmax.f32 %v456, 0.0
      %v535 = vmax.f32 %v461, 0.0
      %v536 = vmax.f32 %v466, 0.0
      %v537 = vmax.f32 %v471, 0.0
      %v538 = vmax.f32 %v476, 0.0
      %v539 = vmax.f32 %v481, 0.0
      %v540 = vmax.f32 %v486, 0.0
      %v541 = vmax.f32 %v491, 0.0
      %v542 = vmax.f32 %v496, 0.0
      %v543 = vmax.f32 %v501, 0.0
      %v544 = vmax.f32 %v506, 0.0
      %v545 = vmax.f32 %v511, 0.0
      %v546 = vmax.f32 %v516, 0.0
      %v547 = vmax.f32 %v521, 0.0
      %v548 = vmax.f32 %v526, 0.0
      %v549 = vmax.f32 %v531, 0.0
      %550 = vst [vmem:[#allocation3] sm:$0xff] %v534
      %551 = vst [vmem:[#allocation3 + $0x8] sm:$0xff] %v535
      %552 = vst [vmem:[#allocation3 + $0x10] sm:$0xff] %v536
      %553 = vst [vmem:[#allocation3 + $0x18] sm:$0xff] %v537
      %554 = vst [vmem:[#allocation3 + $0x20] sm:$0xff] %v538
      %555 = vst [vmem:[#allocation3 + $0x28] sm:$0xff] %v539
      %556 = vst [vmem:[#allocation3 + $0x30] sm:$0xff] %v540
      %557 = vst [vmem:[#allocation3 + $0x38] sm:$0xff] %v541
      %558 = vst [vmem:[#allocation3 + $0x40] sm:$0xff] %v542
      %559 = vst [vmem:[#allocation3 + $0x48] sm:$0xff] %v543
      %560 = vst [vmem:[#allocation3 + $0x50] sm:$0xff] %v544
      %561 = vst [vmem:[#allocation3 + $0x58] sm:$0xff] %v545
      %562 = vst [vmem:[#allocation3 + $0x60] sm:$0xff] %v546
      %563 = vst [vmem:[#allocation3 + $0x68] sm:$0xff] %v547
      %564 = vst [vmem:[#allocation3 + $0x70] sm:$0xff] %v548
      %565 = vst [vmem:[#allocation3 + $0x78] sm:$0xff] %v549
    $region25: #{tpu_custom_call.1} parent=1 // pred_fallthru
      _
    // Predicated region
    $region26: #{tpu_custom_call.1} parent=1 // pred_check
      _
    $region27: #{tpu_custom_call.1} parent=1 // pred_check_branch
      %567 = sbr.rel (0) target = $region29
    $region28: #{tpu_custom_call.1} parent=1 // pred_region
      %s569 = ssub.s32 2048, 2048
      %570 = vsyncadd [#allocation4], %s569
      %s571 = sshll.u32 [#allocation3], 4
      %s572 = int_to_ptr.vmem [resolvable:$true] %s571
      %577 = dma.vmem_to_hbm [thread:$0]  %s572, 2048, %s4, [#allocation4], 128, 128, 8
    $region29: #{tpu_custom_call.1} parent=1 // pred_fallthru
      _
    // Predicated region
    $region30: #{tpu_custom_call.1} parent=1 // pred_check
      _
    $region31: #{tpu_custom_call.1} parent=1 // pred_check_branch
      %579 = sbr.rel (0) target = $region33
    $region32: #{tpu_custom_call.1} parent=1 // pred_region
      %580 = dma.done [#allocation4], 2048
    $region33: #{tpu_custom_call.1} parent=1 // pred_fallthru
      _
    %581 = vsyncpa [#allocation4], 1

</llo_original>
